<compile_context>
chip_gen: v7x
topology: tpu7x:2x2x1
jax: 0.10.0
libtpu: 0.0.40
codegen_flags: <defaults>
</compile_context>

<pallas_src>
import jax
import jax.numpy as jnp
from jax.experimental import pallas as pl
from jax.experimental.pallas import tpu as pltpu


def _frozen_bn_kernel(scale_ref, bias_ref, x_ref, o_ref):
    # Streaming FMA in f32; scale/bias broadcast across lanes (layout A,
    # shape (tr, 1)) or across sublanes (layout B, shape (1, ts)).
    x = x_ref[...].astype(jnp.float32)
    o_ref[...] = (x * scale_ref[...] + bias_ref[...]).astype(o_ref.dtype)


def _choose_tiles(num_rows, width, itemsize, tile_bytes):
    """Pick (row_tile, lane_tile) for a (num_rows, width) array."""
    sub = max(8, 32 // itemsize)        # sublane pack depth for this dtype
    lane = 128
    row_group = min(num_rows, sub)

    # Lane tile: full width if a sublane-deep full-width group fits the
    # budget, otherwise the largest multiple of 128 that keeps it in budget.
    if width <= lane or row_group * width * itemsize <= tile_bytes:
        ts = width
    else:
        ts = max(lane, (tile_bytes // (row_group * itemsize)) // lane * lane)
        ts = min(ts, width)

    # Row tile: as many sublane groups as fit the budget (ragged edge is
    # handled by Pallas masking, so no divisor search / padding needed).
    rows_fit = max(1, tile_bytes // max(1, ts * itemsize))
    tr = min(num_rows, max(sub, (rows_fit // sub) * sub))

    # Prefer >= 2 grid steps on non-trivial inputs (pipelining / megacore).
    row_blocks = -(-num_rows // tr)
    lane_blocks = -(-width // ts)
    if (row_blocks * lane_blocks == 1
            and num_rows * width * itemsize > (1 << 20) and tr > sub):
        tr = max(sub, ((tr + 1) // 2) // sub * sub)
    return tr, ts


def frozen_batch_norm_2d(x, weight, bias, running_mean, running_var,
                         *, tile_bytes=4 * 1024 * 1024, donate_x=False):
    """x: (N, C, H, W); params: (C,). Returns (N, C, H, W), matching PyTorch."""
    N, C, H, W = x.shape
    S = H * W
    itemsize = jnp.dtype(x.dtype).itemsize

    # Per-channel affine, computed once outside the kernel, kept in float32.
    eps = jnp.float32(1e-5)
    scale_c = weight.astype(jnp.float32) * jax.lax.rsqrt(
        running_var.astype(jnp.float32) + eps)
    bias_c = bias.astype(jnp.float32) - running_mean.astype(jnp.float32) * scale_c

    lane_dense = (S >= 128) and (S % 128 == 0)
    if lane_dense:
        # Layout A: rows = (n, c), width = H*W (lane-dense, unmasked stores).
        Rtot, Wtot = N * C, S
        x2 = x.reshape(Rtot, Wtot)
        scale_v = jnp.broadcast_to(scale_c[None, :], (N, C)).reshape(Rtot, 1)
        bias_v = jnp.broadcast_to(bias_c[None, :], (N, C)).reshape(Rtot, 1)
    else:
        # Layout B: channel-packed rows = n, width = C*H*W; per-lane affine.
        Rtot, Wtot = N, C * S
        x2 = x.reshape(Rtot, Wtot)
        scale_v = jnp.repeat(scale_c, S)[None, :]
        bias_v = jnp.repeat(bias_c, S)[None, :]

    tr, ts = _choose_tiles(Rtot, Wtot, itemsize, tile_bytes)
    grid = (pl.cdiv(Rtot, tr), pl.cdiv(Wtot, ts))

    if lane_dense:
        scale_spec = pl.BlockSpec((tr, 1), lambda i, j: (i, 0))
        bias_spec = pl.BlockSpec((tr, 1), lambda i, j: (i, 0))
    else:
        scale_spec = pl.BlockSpec((1, ts), lambda i, j: (0, j))
        bias_spec = pl.BlockSpec((1, ts), lambda i, j: (0, j))
    x_spec = pl.BlockSpec((tr, ts), lambda i, j: (i, j))

    extra = {}
    if donate_x:
        extra["input_output_aliases"] = {2: 0}

    out2 = pl.pallas_call(
        _frozen_bn_kernel,
        out_shape=jax.ShapeDtypeStruct((Rtot, Wtot), x.dtype),
        grid=grid,
        in_specs=[scale_spec, bias_spec, x_spec],
        out_specs=x_spec,
        compiler_params=pltpu.CompilerParams(
            dimension_semantics=("parallel", "parallel"),
            vmem_limit_bytes=int(max(32 << 20, 5 * tile_bytes)),
        ),
        cost_estimate=pl.CostEstimate(
            flops=2 * Rtot * Wtot,
            bytes_accessed=2 * Rtot * Wtot * itemsize + 8 * max(Rtot, Wtot),
            transcendentals=0,
        ),
        **extra,
    )(scale_v, bias_v, x2)

    return out2.reshape(N, C, H, W)


def frozen_batch_norm_2d_ref(x, weight, bias, running_mean, running_var):
    """Pure-JAX reference matching the PyTorch forward."""
    w = weight.reshape(1, -1, 1, 1)
    b = bias.reshape(1, -1, 1, 1)
    rv = running_var.reshape(1, -1, 1, 1)
    rm = running_mean.reshape(1, -1, 1, 1)
    eps = 1e-5
    scale = w * jax.lax.rsqrt(rv + eps)
    bias_t = b - rm * scale
    return x * scale + bias_t


def _make_inputs(key, N, C, H, W):
    k_x, k_w, k_b, k_rm, k_rv = jax.random.split(key, 5)
    x = jax.random.normal(k_x, (N, C, H, W), dtype=jnp.float32)
    weight = jax.random.normal(k_w, (C,), dtype=jnp.float32) * 0.1 + 1.0
    bias = jax.random.normal(k_b, (C,), dtype=jnp.float32) * 0.1
    running_mean = jax.random.normal(k_rm, (C,), dtype=jnp.float32) * 0.5
    running_var = jax.random.uniform(k_rv, (C,), dtype=jnp.float32,
                                     minval=0.5, maxval=1.5)
    return x, weight, bias, running_mean, running_var


if __name__ == "__main__":
    key = jax.random.PRNGKey(0)
    keys = jax.random.split(key, 4)

    # 1) Primary: module-consistent small shape (lane-dense layout A).
    x, w, b, rm, rv = _make_inputs(keys[0], 2, 4, 16, 16)
    out = jax.block_until_ready(frozen_batch_norm_2d(x, w, b, rm, rv))
    ref = frozen_batch_norm_2d_ref(x, w, b, rm, rv)
    assert out.shape == x.shape
    assert jnp.allclose(out, ref, atol=1e-5, rtol=1e-5), "mismatch (primary)"

    # 2) Ragged row edge: R=9 rows, tr=8 -> Pallas masks the last block.
    x, w, b, rm, rv = _make_inputs(keys[1], 3, 3, 16, 16)
    out = jax.block_until_ready(
        frozen_batch_norm_2d(x, w, b, rm, rv, tile_bytes=8 * 1024))
    ref = frozen_batch_norm_2d_ref(x, w, b, rm, rv)
    assert jnp.allclose(out, ref, atol=1e-5, rtol=1e-5), "mismatch (ragged rows)"

    # 3) Non-multiple-of-128 spatial (ResNet-style 7x7) -> channel-packed B.
    x, w, b, rm, rv = _make_inputs(keys[2], 2, 8, 7, 7)
    out = jax.block_until_ready(frozen_batch_norm_2d(x, w, b, rm, rv))
    ref = frozen_batch_norm_2d_ref(x, w, b, rm, rv)
    assert jnp.allclose(out, ref, atol=1e-5, rtol=1e-5), "mismatch (packed)"

    # 4) Channel-packed layout with lane tiling and a ragged lane edge.
    x, w, b, rm, rv = _make_inputs(keys[3], 2, 8, 9, 9)
    out = jax.block_until_ready(
        frozen_batch_norm_2d(x, w, b, rm, rv, tile_bytes=1024))
    ref = frozen_batch_norm_2d_ref(x, w, b, rm, rv)
    assert jnp.allclose(out, ref, atol=1e-5, rtol=1e-5), "mismatch (lane ragged)"

    print("KERNEL_OK")
</pallas_src>

<mosaic_0001>
module attributes {stable_mosaic.version = 11 : i64} {
  func.func @_frozen_bn_kernel(%arg0: i32, %arg1: i32, %arg2: memref<8x1xf32, #tpu.memory_space<vmem>>, %arg3: memref<8x1xf32, #tpu.memory_space<vmem>>, %arg4: memref<8x256xf32, #tpu.memory_space<vmem>>, %arg5: memref<8x256xf32, #tpu.memory_space<vmem>>) attributes {dimension_semantics = [#tpu.dimension_semantics<parallel>, #tpu.dimension_semantics<parallel>], iteration_bounds = array<i64: 1, 1>, scalar_prefetch = 0 : i64, scratch_operands = 0 : i64, tpu.core_type = #tpu.core_type<tc>, window_params = [{transform_indices = @transform_0, window_bounds = array<i64: 8, 1>}, {transform_indices = @transform_1, window_bounds = array<i64: 8, 1>}, {transform_indices = @transform_2, window_bounds = array<i64: 8, 256>}, {transform_indices = @transform_3, window_bounds = array<i64: 8, 256>}]} {
    %c0 = arith.constant 0 : index
    %c0_0 = arith.constant 0 : index
    %0 = vector.load %arg4[%c0, %c0_0] : memref<8x256xf32, #tpu.memory_space<vmem>>, vector<8x256xf32>
    %c0_1 = arith.constant 0 : index
    %c0_2 = arith.constant 0 : index
    %1 = vector.load %arg2[%c0_1, %c0_2] : memref<8x1xf32, #tpu.memory_space<vmem>>, vector<8x1xf32>
    %2 = vector.broadcast %1 : vector<8x1xf32> to vector<8x256xf32>
    %3 = arith.mulf %0, %2 : vector<8x256xf32>
    %c0_3 = arith.constant 0 : index
    %c0_4 = arith.constant 0 : index
    %4 = vector.load %arg3[%c0_3, %c0_4] : memref<8x1xf32, #tpu.memory_space<vmem>>, vector<8x1xf32>
    %5 = vector.broadcast %4 : vector<8x1xf32> to vector<8x256xf32>
    %6 = arith.addf %3, %5 : vector<8x256xf32>
    %c0_5 = arith.constant 0 : index
    %c0_6 = arith.constant 0 : index
    %7 = vector.load %arg5[%c0_5, %c0_6] : memref<8x256xf32, #tpu.memory_space<vmem>>, vector<8x256xf32>
    tpu.vector_store %arg5[%c0_5, %c0_6], %6 {strides = array<i32>} : memref<8x256xf32, #tpu.memory_space<vmem>>, vector<8x256xf32>,
    return
  }
  func.func @transform_0(%arg0: i32, %arg1: i32) -> (i32, i32) {
    %c0_i32 = arith.constant 0 : i32
    %c0_i32_0 = arith.constant 0 : i32
    return %arg0, %c0_i32 : i32, i32
  }
  func.func @transform_1(%arg0: i32, %arg1: i32) -> (i32, i32) {
    %c0_i32 = arith.constant 0 : i32
    %c0_i32_0 = arith.constant 0 : i32
    return %arg0, %c0_i32 : i32, i32
  }
  func.func @transform_2(%arg0: i32, %arg1: i32) -> (i32, i32) {
    %c0_i32 = arith.constant 0 : i32
    return %arg0, %arg1 : i32, i32
  }
  func.func @transform_3(%arg0: i32, %arg1: i32) -> (i32, i32) {
    %c0_i32 = arith.constant 0 : i32
    return %arg0, %arg1 : i32, i32
  }
}

</mosaic_0001>

<llo_original>
// kernel: tpu_custom_call.1
$region0: #{tpu_custom_call.1}
  #allocation0 [shape = 'u32[]', space=smem, size = 0x4, offset = 0x4, fixed_abs, tag = 'smem constant byte address 0x4 - core index']
  #allocation1 [shape = 'u32[144,128]{1,0:T(1,128)}', space=vmem, size = 0x12000, scoped, tag = 'internal scratch']
  %s0 = inlined_call_operand.vmem [shape: f32[8,1], index: 0, kind: input, shape index: {}]
  %s1 = inlined_call_operand.vmem [shape: f32[8,1], index: 1, kind: input, shape index: {}]
  %s2 = inlined_call_operand.vmem [shape: f32[8,256], index: 2, kind: input, shape index: {}]
  %s3 = inlined_call_operand.hbm [shape: f32[8,256], index: 3, kind: output, shape index: {}]
  %s4 = sld [smem:[#allocation0]]
  $region22: #{tpu_custom_call.1} parent=0
    _
  %s6 = ssub.s32 1, %s4
  %s7 = scalar_select 0, %s6, %s4
  $region1: #{tpu_custom_call.1} parent=0
    #allocation2 [shape = 'u8[8192]{0}', space=vmem, size = 0x2000, scoped, tag = 'output window, operand 0, single buffered']
    #allocation3 [shape = 's32[1]{0}', space=sflag, size = 0x4, scoped, tag = 'scoped memory for tpu_custom_call.1']
    %8 = vsyncpa [#allocation3], 0
    // Predicated region
    $region2: #{tpu_custom_call.1} parent=1 // pred_check
      _
    $region3: #{tpu_custom_call.1} parent=1 // pred_check_branch
      %10 = sbr.rel (0) target = $region5
    $region4: #{tpu_custom_call.1} parent=1 // pred_region
      _
    $region5: #{tpu_custom_call.1} parent=1 // pred_fallthru
      _
    // Predicated region
    $region6: #{tpu_custom_call.1} parent=1 // pred_check
      _
    $region7: #{tpu_custom_call.1} parent=1 // pred_check_branch
      %12 = sbr.rel (0) target = $region9
    $region8: #{tpu_custom_call.1} parent=1 // pred_region
      _
    $region9: #{tpu_custom_call.1} parent=1 // pred_fallthru
      _
    // Predicated region
    $region10: #{tpu_custom_call.1} parent=1 // pred_check
      _
    $region11: #{tpu_custom_call.1} parent=1 // pred_check_branch
      %14 = sbr.rel (0) target = $region13
    $region12: #{tpu_custom_call.1} parent=1 // pred_region
      _
    $region13: #{tpu_custom_call.1} parent=1 // pred_fallthru
      _
    %v15 = vld [vmem:[%s2] sm:$0xff]
    %v16 = vld [vmem:[%s2 + $0x8] sm:$0xff]
    %v17 = vld [vmem:[%s0] sm:$0xff]
    %19 = vset.pattern.permute.xlu0 0
    %20 = vperm.xlu0 %19, %v17
    %v21 = vpop.permute.xlu0 %20
    %v23 = vmul.f32 %v15, %v21
    %v24 = vmul.f32 %v16, %v21
    %v25 = vld [vmem:[%s1] sm:$0xff]
    %27 = vset.pattern.permute.xlu0 0
    %28 = vperm.xlu0 %27, %v25
    %v29 = vpop.permute.xlu0 %28
    %v31 = vadd.f32 %v23, %v29
    %v32 = vadd.f32 %v24, %v29
    %33 = vst [vmem:[#allocation2] sm:$0xff] %v31
    %34 = vst [vmem:[#allocation2 + $0x8] sm:$0xff] %v32
    // Predicated region
    $region14: #{tpu_custom_call.1} parent=1 // pred_check
      _
    $region15: #{tpu_custom_call.1} parent=1 // pred_check_branch
      %36 = sbr.rel (0) target = $region17
    $region16: #{tpu_custom_call.1} parent=1 // pred_region
      %s38 = ssub.s32 256, 256
      %39 = vsyncadd [#allocation3], %s38
      %s41 = sshll.u32 [#allocation2], 4
      %s42 = int_to_ptr.vmem [resolvable:$true] %s41
      %44 = dma.vmem_to_hbm [thread:$0]  %s42, 256, %s3, [#allocation3]
    $region17: #{tpu_custom_call.1} parent=1 // pred_fallthru
      _
    // Predicated region
    $region18: #{tpu_custom_call.1} parent=1 // pred_check
      _
    $region19: #{tpu_custom_call.1} parent=1 // pred_check_branch
      %46 = sbr.rel (0) target = $region21
    $region20: #{tpu_custom_call.1} parent=1 // pred_region
      %47 = dma.done [#allocation3], 256
    $region21: #{tpu_custom_call.1} parent=1 // pred_fallthru
      _
    %48 = vsyncpa [#allocation3], 1

</llo_original>
